<compile_context>
chip_gen: v7x
topology: tpu7x:2x2x1
jax: 0.10.0
libtpu: 0.0.40
codegen_flags: <defaults>
</compile_context>

<pallas_src>
import jax
import jax.numpy as jnp
from jax.experimental import pallas as pl
from jax.experimental.pallas import tpu as pltpu

KH = KW = 5
STRIDE = 2
IN_H = IN_W = 64
OUT_C = 8
OUT_H = (IN_H - KH) // STRIDE + 1      # 30
OUT_W = (IN_W - KW) // STRIDE + 1      # 30
N_VALID = OUT_H * OUT_W                # 900
K_TAPS = KH * KW                       # 25
K_PAD = 32                             # contraction dim padded (taps + bias row + zeros)
N_PAD = 1024                           # output columns padded to 8 * 128 (lane-dense)
BIAS_ROW = K_TAPS                      # row 25 of the patch slab holds ones (bias fold)


def conv_mm_kernel(p_ref, w_ref, o_ref):
    """p_ref: (32, 1024) VMEM f32  im2col patch slab (row 25 = ones, rows 26..31 = 0)
       w_ref: (8, 32)    VMEM f32  3x conv weights (col 25 = 3*bias, cols 26..31 = 0)
       o_ref: (8, 1024)  VMEM f32  lane-dense output (valid cols: 0..899)
    """
    # Single MXU contraction over the padded tap axis; bias rides along in the
    # contraction (row/col 25), so the epilogue is just ReLU + full-lane store.
    y = jnp.dot(w_ref[...], p_ref[...], preferred_element_type=jnp.float32)
    o_ref[...] = jnp.maximum(y, jnp.float32(0.0))


@jax.jit
def model_forward(x_nchw, weight, bias):
    """x_nchw: (1,1,64,64) f32, weight: (8,1,5,5) f32, bias: (8,) f32
       returns (1,8,30,30) f32"""
    x = x_nchw[0, 0].astype(jnp.float32)                         # (64, 64)

    # im2col via strided slices (pure data movement, fuses under jit):
    #   patches[kh*KW + kw, i*OUT_W + j] = x[2i + kh, 2j + kw]
    # Tap ordering kh*KW+kw matches weight.reshape(OUT_C, KH*KW) row-major.
    taps = [
        x[kh::STRIDE, kw::STRIDE][:OUT_H, :OUT_W]
        for kh in range(KH) for kw in range(KW)
    ]
    patches = jnp.stack(taps, axis=0).reshape(K_TAPS, N_VALID)   # (25, 900)

    # Append the bias row (ones) and zero rows up to K_PAD, then lane-pad.
    ones_row = jnp.ones((1, N_VALID), jnp.float32)
    zero_rows = jnp.zeros((K_PAD - K_TAPS - 1, N_VALID), jnp.float32)
    patches = jnp.concatenate([patches, ones_row, zero_rows], axis=0)   # (32, 900)
    patches = jnp.pad(patches, ((0, 0), (0, N_PAD - N_VALID)))          # (32, 1024)

    # Fold the x3 (three summed convs, shared weights) into weights + bias.
    w3 = (3.0 * weight.reshape(OUT_C, K_TAPS)).astype(jnp.float32)      # (8, 25)
    b3 = (3.0 * bias).astype(jnp.float32).reshape(OUT_C, 1)             # (8, 1)
    wb = jnp.concatenate(
        [w3, b3, jnp.zeros((OUT_C, K_PAD - K_TAPS - 1), jnp.float32)],
        axis=1)                                                         # (8, 32)
    # (bf16 inputs + f32 accumulation would halve the DMA on v6e/v7x; kept f32
    #  here — the problem is latency-bound and the reference tolerance is 1e-4.)

    out_padded = pl.pallas_call(
        conv_mm_kernel,
        out_shape=jax.ShapeDtypeStruct((OUT_C, N_PAD), jnp.float32),
        in_specs=[
            pl.BlockSpec(memory_space=pltpu.MemorySpace.VMEM),
            pl.BlockSpec(memory_space=pltpu.MemorySpace.VMEM),
        ],
        out_specs=pl.BlockSpec(memory_space=pltpu.MemorySpace.VMEM),
    )(patches, wb)

    # Padded columns 900..1023 contain relu(3*bias); slice them away here.
    return out_padded[:, :N_VALID].reshape(1, OUT_C, OUT_H, OUT_W)


@jax.jit
def reference_forward(x_nchw, weight, bias):
    """Pure-JAX reference using lax conv (NCHW / OIHW)."""
    conv = jax.lax.conv_general_dilated(
        x_nchw, weight,
        window_strides=(STRIDE, STRIDE),
        padding="VALID",
        dimension_numbers=("NCHW", "OIHW", "NCHW"),
    ) + bias.reshape(1, OUT_C, 1, 1)
    return jnp.maximum(conv + conv + conv, 0.0)


if __name__ == "__main__":
    key = jax.random.PRNGKey(0)
    kx, kw, kb = jax.random.split(key, 3)

    # Deterministic synthetic parameters (shapes from Conv2d(1, 8, 5, bias=True)).
    x1 = jax.random.normal(kx, (1, 1, IN_H, IN_W), dtype=jnp.float32)
    weight = jax.random.normal(kw, (OUT_C, 1, KH, KW), dtype=jnp.float32) * 0.2
    bias = jax.random.normal(kb, (OUT_C,), dtype=jnp.float32) * 0.1

    out = jax.block_until_ready(model_forward(x1, weight, bias))
    ref = jax.block_until_ready(reference_forward(x1, weight, bias))

    assert out.shape == (1, OUT_C, OUT_H, OUT_W)
    assert jnp.allclose(out, ref, atol=1e-4, rtol=1e-4), "mismatch vs reference"

    print("KERNEL_OK")
</pallas_src>

<mosaic_0001>
module attributes {stable_mosaic.version = 11 : i64} {
  func.func @conv_mm_kernel(%arg0: memref<32x1024xf32, #tpu.memory_space<vmem>>, %arg1: memref<8x32xf32, #tpu.memory_space<vmem>>, %arg2: memref<8x1024xf32, #tpu.memory_space<vmem>>) attributes {dimension_semantics = [], scalar_prefetch = 0 : i64, scratch_operands = 0 : i64, tpu.core_type = #tpu.core_type<tc>} {
    %c0 = arith.constant 0 : index
    %c0_0 = arith.constant 0 : index
    %0 = vector.load %arg1[%c0, %c0_0] : memref<8x32xf32, #tpu.memory_space<vmem>>, vector<8x32xf32>
    %c0_1 = arith.constant 0 : index
    %c0_2 = arith.constant 0 : index
    %1 = vector.load %arg0[%c0_1, %c0_2] : memref<32x1024xf32, #tpu.memory_space<vmem>>, vector<32x1024xf32>
    %cst = arith.constant dense<0.000000e+00> : vector<8x1024xf32>
    %2 = tpu.matmul %0, %1, %cst {dimension_numbers = #tpu.dot_dimension_numbers<[1], [0], [0], [1], [0, 0, 1, 1], [], []>} : vector<8x32xf32>, vector<32x1024xf32>, vector<8x1024xf32> -> vector<8x1024xf32>
    %cst_3 = arith.constant 0.000000e+00 : f32
    %3 = vector.broadcast %cst_3 : f32 to vector<8x1024xf32>
    %4 = arith.maximumf %2, %3 : vector<8x1024xf32>
    %c0_4 = arith.constant 0 : index
    %c0_5 = arith.constant 0 : index
    %5 = vector.load %arg2[%c0_4, %c0_5] : memref<8x1024xf32, #tpu.memory_space<vmem>>, vector<8x1024xf32>
    tpu.vector_store %arg2[%c0_4, %c0_5], %4 {strides = array<i32>} : memref<8x1024xf32, #tpu.memory_space<vmem>>, vector<8x1024xf32>,
    return
  }
}

</mosaic_0001>

<llo_original>
// kernel: model_forward.1
$region0: #{model_forward.1}
  #allocation0 [shape = 'u32[]', space=smem, size = 0x4, offset = 0x4, fixed_abs, tag = 'smem constant byte address 0x4 - core index']
  #allocation1 [shape = 'u32[144,128]{1,0:T(1,128)}', space=vmem, size = 0x12000, scoped, tag = 'internal scratch']
  %s0 = inlined_call_operand.vmem [shape: f32[32,1024], index: 0, kind: input, shape index: {}]
  %s1 = inlined_call_operand.vmem [shape: f32[8,32], index: 1, kind: input, shape index: {}]
  %s2 = inlined_call_operand.vmem [shape: f32[8,1024], index: 2, kind: output, shape index: {}]
  %s3 = sld [smem:[#allocation0]]
  $region18: #{model_forward.1} parent=0
    _
  %s5 = ssub.s32 1, %s3
  %s6 = scalar_select 0, %s5, %s3
  // Predicated region
  $region2: #{model_forward.1} parent=0 // pred_check
    _
  $region3: #{model_forward.1} parent=0 // pred_check_branch
    %8 = sbr.rel (0) target = $region5
  $region4: #{model_forward.1} parent=0 // pred_region
    _
  $region5: #{model_forward.1} parent=0 // pred_fallthru
    _
  // Predicated region
  $region6: #{model_forward.1} parent=0 // pred_check
    _
  $region7: #{model_forward.1} parent=0 // pred_check_branch
    %10 = sbr.rel (0) target = $region9
  $region8: #{model_forward.1} parent=0 // pred_region
    _
  $region9: #{model_forward.1} parent=0 // pred_fallthru
    _
  %v11 = vld [vmem:[%s1] sm:$0xff]
  %v12 = vld [vmem:[%s0] sm:$0xff]
  %v13 = vld [vmem:[%s0 + $0x8] sm:$0xff]
  %v14 = vld [vmem:[%s0 + $0x10] sm:$0xff]
  %v15 = vld [vmem:[%s0 + $0x18] sm:$0xff]
  %v16 = vld [vmem:[%s0 + $0x20] sm:$0xff]
  %v17 = vld [vmem:[%s0 + $0x28] sm:$0xff]
  %v18 = vld [vmem:[%s0 + $0x30] sm:$0xff]
  %v19 = vld [vmem:[%s0 + $0x38] sm:$0xff]
  %v20 = vld [vmem:[%s0 + $0x40] sm:$0xff]
  %v21 = vld [vmem:[%s0 + $0x48] sm:$0xff]
  %v22 = vld [vmem:[%s0 + $0x50] sm:$0xff]
  %v23 = vld [vmem:[%s0 + $0x58] sm:$0xff]
  %v24 = vld [vmem:[%s0 + $0x60] sm:$0xff]
  %v25 = vld [vmem:[%s0 + $0x68] sm:$0xff]
  %v26 = vld [vmem:[%s0 + $0x70] sm:$0xff]
  %v27 = vld [vmem:[%s0 + $0x78] sm:$0xff]
  %v28 = vld [vmem:[%s0 + $0x80] sm:$0xff]
  %v29 = vld [vmem:[%s0 + $0x88] sm:$0xff]
  %v30 = vld [vmem:[%s0 + $0x90] sm:$0xff]
  %v31 = vld [vmem:[%s0 + $0x98] sm:$0xff]
  %v32 = vld [vmem:[%s0 + $0xa0] sm:$0xff]
  %v33 = vld [vmem:[%s0 + $0xa8] sm:$0xff]
  %v34 = vld [vmem:[%s0 + $0xb0] sm:$0xff]
  %v35 = vld [vmem:[%s0 + $0xb8] sm:$0xff]
  %v36 = vld [vmem:[%s0 + $0xc0] sm:$0xff]
  %v37 = vld [vmem:[%s0 + $0xc8] sm:$0xff]
  %v38 = vld [vmem:[%s0 + $0xd0] sm:$0xff]
  %v39 = vld [vmem:[%s0 + $0xd8] sm:$0xff]
  %v40 = vld [vmem:[%s0 + $0xe0] sm:$0xff]
  %v41 = vld [vmem:[%s0 + $0xe8] sm:$0xff]
  %v42 = vld [vmem:[%s0 + $0xf0] sm:$0xff]
  %v43 = vld [vmem:[%s0 + $0xf8] sm:$0xff]
  %vm44 = vcmask 261120
  %v46 = vsel %vm44, %v11, 0
  %48 = vmatprep.subr.mxu0 %v13
  %49 = vmatpush1.msra.mxu0 %v12
  %50 = vmatprep.subr.mxu0 %v21
  %51 = vmatpush1.msra.mxu0 %v20
  %52 = vmatprep.subr.mxu0 %v29
  %53 = vmatpush1.msra.mxu0 %v28
  %54 = vmatprep.subr.mxu0 %v37
  %55 = vmatpush1.msra.mxu0 %v36
  %56 = vmatprep.subr.mxu0 0.0
  %57 = vmatpush1.msra.mxu0 0.0
  %58 = vmatprep.subr.mxu0 0.0
  %59 = vmatpush1.msra.mxu0 0.0
  %60 = vmatprep.subr.mxu0 0.0
  %61 = vmatpush1.msra.mxu0 0.0
  %62 = vmatprep.subr.mxu0 0.0
  %63 = vmatpush1.msra.mxu0 0.0
  %64 = vmatprep.subr.mxu0 0.0
  %65 = vmatpush1.msra.mxu0 0.0
  %66 = vmatprep.subr.mxu0 0.0
  %67 = vmatpush1.msra.mxu0 0.0
  %68 = vmatprep.subr.mxu0 0.0
  %69 = vmatpush1.msra.mxu0 0.0
  %70 = vmatprep.subr.mxu0 0.0
  %71 = vmatpush1.msra.mxu0 0.0
  %72 = vmatprep.subr.mxu0 0.0
  %73 = vmatpush1.msra.mxu0 0.0
  %74 = vmatprep.subr.mxu0 0.0
  %75 = vmatpush1.msra.mxu0 0.0
  %76 = vmatprep.subr.mxu0 0.0
  %77 = vmatpush1.msra.mxu0 0.0
  %78 = vmatprep.subr.mxu0 0.0
  %79 = vmatpush1.msra.mxu0 0.0
  %80 = vmatprep.subr.mxu0 0.0
  %81 = vmatpush1.msra.mxu0 0.0
  %82 = vmatprep.subr.mxu0 0.0
  %83 = vmatpush1.msra.mxu0 0.0
  %84 = vmatprep.subr.mxu0 0.0
  %85 = vmatpush1.msra.mxu0 0.0
  %86 = vmatprep.subr.mxu0 0.0
  %87 = vmatpush1.msra.mxu0 0.0
  %88 = vmatprep.subr.mxu0 0.0
  %89 = vmatpush1.msra.mxu0 0.0
  %90 = vmatprep.subr.mxu0 0.0
  %91 = vmatpush1.msra.mxu0 0.0
  %92 = vmatprep.subr.mxu0 0.0
  %93 = vmatpush1.msra.mxu0 0.0
  %94 = vmatprep.subr.mxu0 0.0
  %95 = vmatpush1.msra.mxu0 0.0
  %96 = vmatprep.subr.mxu0 0.0
  %97 = vmatpush1.msra.mxu0 0.0
  %98 = vmatprep.subr.mxu0 0.0
  %99 = vmatpush1.msra.mxu0 0.0
  %100 = vmatprep.subr.mxu0 0.0
  %101 = vmatpush1.msra.mxu0 0.0
  %102 = vmatprep.subr.mxu0 0.0
  %103 = vmatpush1.msra.mxu0 0.0
  %104 = vmatprep.subr.mxu0 0.0
  %105 = vmatpush1.msra.mxu0 0.0
  %106 = vmatprep.subr.mxu0 0.0
  %107 = vmatpush1.msra.mxu0 0.0
  %108 = vmatprep.subr.mxu0 0.0
  %109 = vmatpush1.msra.mxu0 0.0
  %110 = vmatprep.subr.mxu0 0.0
  %111 = vmatpush1.msra.mxu0 0.0
  %112 = vmatprep.mubr.f32.mxu0 0.0
  %113 = vmatmul.mubr.f32.gmra.mrb[0].mxu0 %v46
  %v114 = vpop.f32.mrb[0].mxu0
  %v115 = vadd.f32 0.0, %v114
  %v116 = vpop.f32.mrb[0].mxu0
  %v117 = vadd.f32 0.0, %v116
  %118 = vdwg.mxu0
  %119 = vmatprep.subr.mxu0 %v15
  %120 = vmatpush1.msra.mxu0 %v14
  %121 = vmatprep.subr.mxu0 %v23
  %122 = vmatpush1.msra.mxu0 %v22
  %123 = vmatprep.subr.mxu0 %v31
  %124 = vmatpush1.msra.mxu0 %v30
  %125 = vmatprep.subr.mxu0 %v39
  %126 = vmatpush1.msra.mxu0 %v38
  %127 = vmatprep.subr.mxu0 0.0
  %128 = vmatpush1.msra.mxu0 0.0
  %129 = vmatprep.subr.mxu0 0.0
  %130 = vmatpush1.msra.mxu0 0.0
  %131 = vmatprep.subr.mxu0 0.0
  %132 = vmatpush1.msra.mxu0 0.0
  %133 = vmatprep.subr.mxu0 0.0
  %134 = vmatpush1.msra.mxu0 0.0
  %135 = vmatprep.subr.mxu0 0.0
  %136 = vmatpush1.msra.mxu0 0.0
  %137 = vmatprep.subr.mxu0 0.0
  %138 = vmatpush1.msra.mxu0 0.0
  %139 = vmatprep.subr.mxu0 0.0
  %140 = vmatpush1.msra.mxu0 0.0
  %141 = vmatprep.subr.mxu0 0.0
  %142 = vmatpush1.msra.mxu0 0.0
  %143 = vmatprep.subr.mxu0 0.0
  %144 = vmatpush1.msra.mxu0 0.0
  %145 = vmatprep.subr.mxu0 0.0
  %146 = vmatpush1.msra.mxu0 0.0
  %147 = vmatprep.subr.mxu0 0.0
  %148 = vmatpush1.msra.mxu0 0.0
  %149 = vmatprep.subr.mxu0 0.0
  %150 = vmatpush1.msra.mxu0 0.0
  %151 = vmatprep.subr.mxu0 0.0
  %152 = vmatpush1.msra.mxu0 0.0
  %153 = vmatprep.subr.mxu0 0.0
  %154 = vmatpush1.msra.mxu0 0.0
  %155 = vmatprep.subr.mxu0 0.0
  %156 = vmatpush1.msra.mxu0 0.0
  %157 = vmatprep.subr.mxu0 0.0
  %158 = vmatpush1.msra.mxu0 0.0
  %159 = vmatprep.subr.mxu0 0.0
  %160 = vmatpush1.msra.mxu0 0.0
  %161 = vmatprep.subr.mxu0 0.0
  %162 = vmatpush1.msra.mxu0 0.0
  %163 = vmatprep.subr.mxu0 0.0
  %164 = vmatpush1.msra.mxu0 0.0
  %165 = vmatprep.subr.mxu0 0.0
  %166 = vmatpush1.msra.mxu0 0.0
  %167 = vmatprep.subr.mxu0 0.0
  %168 = vmatpush1.msra.mxu0 0.0
  %169 = vmatprep.subr.mxu0 0.0
  %170 = vmatpush1.msra.mxu0 0.0
  %171 = vmatprep.subr.mxu0 0.0
  %172 = vmatpush1.msra.mxu0 0.0
  %173 = vmatprep.subr.mxu0 0.0
  %174 = vmatpush1.msra.mxu0 0.0
  %175 = vmatprep.subr.mxu0 0.0
  %176 = vmatpush1.msra.mxu0 0.0
  %177 = vmatprep.subr.mxu0 0.0
  %178 = vmatpush1.msra.mxu0 0.0
  %179 = vmatprep.subr.mxu0 0.0
  %180 = vmatpush1.msra.mxu0 0.0
  %181 = vmatprep.subr.mxu0 0.0
  %182 = vmatpush1.msra.mxu0 0.0
  %183 = vmatprep.mubr.f32.mxu0 0.0
  %184 = vmatmul.mubr.f32.gmra.mrb[0].mxu0 %v46
  %v185 = vpop.f32.mrb[0].mxu0
  %v186 = vadd.f32 0.0, %v185
  %v187 = vpop.f32.mrb[0].mxu0
  %v188 = vadd.f32 0.0, %v187
  %189 = vdwg.mxu0
  %190 = vmatprep.subr.mxu0 %v17
  %191 = vmatpush1.msra.mxu0 %v16
  %192 = vmatprep.subr.mxu0 %v25
  %193 = vmatpush1.msra.mxu0 %v24
  %194 = vmatprep.subr.mxu0 %v33
  %195 = vmatpush1.msra.mxu0 %v32
  %196 = vmatprep.subr.mxu0 %v41
  %197 = vmatpush1.msra.mxu0 %v40
  %198 = vmatprep.subr.mxu0 0.0
  %199 = vmatpush1.msra.mxu0 0.0
  %200 = vmatprep.subr.mxu0 0.0
  %201 = vmatpush1.msra.mxu0 0.0
  %202 = vmatprep.subr.mxu0 0.0
  %203 = vmatpush1.msra.mxu0 0.0
  %204 = vmatprep.subr.mxu0 0.0
  %205 = vmatpush1.msra.mxu0 0.0
  %206 = vmatprep.subr.mxu0 0.0
  %207 = vmatpush1.msra.mxu0 0.0
  %208 = vmatprep.subr.mxu0 0.0
  %209 = vmatpush1.msra.mxu0 0.0
  %210 = vmatprep.subr.mxu0 0.0
  %211 = vmatpush1.msra.mxu0 0.0
  %212 = vmatprep.subr.mxu0 0.0
  %213 = vmatpush1.msra.mxu0 0.0
  %214 = vmatprep.subr.mxu0 0.0
  %215 = vmatpush1.msra.mxu0 0.0
  %216 = vmatprep.subr.mxu0 0.0
  %217 = vmatpush1.msra.mxu0 0.0
  %218 = vmatprep.subr.mxu0 0.0
  %219 = vmatpush1.msra.mxu0 0.0
  %220 = vmatprep.subr.mxu0 0.0
  %221 = vmatpush1.msra.mxu0 0.0
  %222 = vmatprep.subr.mxu0 0.0
  %223 = vmatpush1.msra.mxu0 0.0
  %224 = vmatprep.subr.mxu0 0.0
  %225 = vmatpush1.msra.mxu0 0.0
  %226 = vmatprep.subr.mxu0 0.0
  %227 = vmatpush1.msra.mxu0 0.0
  %228 = vmatprep.subr.mxu0 0.0
  %229 = vmatpush1.msra.mxu0 0.0
  %230 = vmatprep.subr.mxu0 0.0
  %231 = vmatpush1.msra.mxu0 0.0
  %232 = vmatprep.subr.mxu0 0.0
  %233 = vmatpush1.msra.mxu0 0.0
  %234 = vmatprep.subr.mxu0 0.0
  %235 = vmatpush1.msra.mxu0 0.0
  %236 = vmatprep.subr.mxu0 0.0
  %237 = vmatpush1.msra.mxu0 0.0
  %238 = vmatprep.subr.mxu0 0.0
  %239 = vmatpush1.msra.mxu0 0.0
  %240 = vmatprep.subr.mxu0 0.0
  %241 = vmatpush1.msra.mxu0 0.0
  %242 = vmatprep.subr.mxu0 0.0
  %243 = vmatpush1.msra.mxu0 0.0
  %244 = vmatprep.subr.mxu0 0.0
  %245 = vmatpush1.msra.mxu0 0.0
  %246 = vmatprep.subr.mxu0 0.0
  %247 = vmatpush1.msra.mxu0 0.0
  %248 = vmatprep.subr.mxu0 0.0
  %249 = vmatpush1.msra.mxu0 0.0
  %250 = vmatprep.subr.mxu0 0.0
  %251 = vmatpush1.msra.mxu0 0.0
  %252 = vmatprep.subr.mxu0 0.0
  %253 = vmatpush1.msra.mxu0 0.0
  %254 = vmatprep.mubr.f32.mxu0 0.0
  %255 = vmatmul.mubr.f32.gmra.mrb[0].mxu0 %v46
  %v256 = vpop.f32.mrb[0].mxu0
  %v257 = vadd.f32 0.0, %v256
  %v258 = vpop.f32.mrb[0].mxu0
  %v259 = vadd.f32 0.0, %v258
  %260 = vdwg.mxu0
  %261 = vmatprep.subr.mxu0 %v19
  %262 = vmatpush1.msra.mxu0 %v18
  %263 = vmatprep.subr.mxu0 %v27
  %264 = vmatpush1.msra.mxu0 %v26
  %265 = vmatprep.subr.mxu0 %v35
  %266 = vmatpush1.msra.mxu0 %v34
  %267 = vmatprep.subr.mxu0 %v43
  %268 = vmatpush1.msra.mxu0 %v42
  %269 = vmatprep.subr.mxu0 0.0
  %270 = vmatpush1.msra.mxu0 0.0
  %271 = vmatprep.subr.mxu0 0.0
  %272 = vmatpush1.msra.mxu0 0.0
  %273 = vmatprep.subr.mxu0 0.0
  %274 = vmatpush1.msra.mxu0 0.0
  %275 = vmatprep.subr.mxu0 0.0
  %276 = vmatpush1.msra.mxu0 0.0
  %277 = vmatprep.subr.mxu0 0.0
  %278 = vmatpush1.msra.mxu0 0.0
  %279 = vmatprep.subr.mxu0 0.0
  %280 = vmatpush1.msra.mxu0 0.0
  %281 = vmatprep.subr.mxu0 0.0
  %282 = vmatpush1.msra.mxu0 0.0
  %283 = vmatprep.subr.mxu0 0.0
  %284 = vmatpush1.msra.mxu0 0.0
  %285 = vmatprep.subr.mxu0 0.0
  %286 = vmatpush1.msra.mxu0 0.0
  %287 = vmatprep.subr.mxu0 0.0
  %288 = vmatpush1.msra.mxu0 0.0
  %289 = vmatprep.subr.mxu0 0.0
  %290 = vmatpush1.msra.mxu0 0.0
  %291 = vmatprep.subr.mxu0 0.0
  %292 = vmatpush1.msra.mxu0 0.0
  %293 = vmatprep.subr.mxu0 0.0
  %294 = vmatpush1.msra.mxu0 0.0
  %295 = vmatprep.subr.mxu0 0.0
  %296 = vmatpush1.msra.mxu0 0.0
  %297 = vmatprep.subr.mxu0 0.0
  %298 = vmatpush1.msra.mxu0 0.0
  %299 = vmatprep.subr.mxu0 0.0
  %300 = vmatpush1.msra.mxu0 0.0
  %301 = vmatprep.subr.mxu0 0.0
  %302 = vmatpush1.msra.mxu0 0.0
  %303 = vmatprep.subr.mxu0 0.0
  %304 = vmatpush1.msra.mxu0 0.0
  %305 = vmatprep.subr.mxu0 0.0
  %306 = vmatpush1.msra.mxu0 0.0
  %307 = vmatprep.subr.mxu0 0.0
  %308 = vmatpush1.msra.mxu0 0.0
  %309 = vmatprep.subr.mxu0 0.0
  %310 = vmatpush1.msra.mxu0 0.0
  %311 = vmatprep.subr.mxu0 0.0
  %312 = vmatpush1.msra.mxu0 0.0
  %313 = vmatprep.subr.mxu0 0.0
  %314 = vmatpush1.msra.mxu0 0.0
  %315 = vmatprep.subr.mxu0 0.0
  %316 = vmatpush1.msra.mxu0 0.0
  %317 = vmatprep.subr.mxu0 0.0
  %318 = vmatpush1.msra.mxu0 0.0
  %319 = vmatprep.subr.mxu0 0.0
  %320 = vmatpush1.msra.mxu0 0.0
  %321 = vmatprep.subr.mxu0 0.0
  %322 = vmatpush1.msra.mxu0 0.0
  %323 = vmatprep.subr.mxu0 0.0
  %324 = vmatpush1.msra.mxu0 0.0
  %325 = vmatprep.mubr.f32.mxu0 0.0
  %326 = vmatmul.mubr.f32.gmra.mrb[0].mxu0 %v46
  %v327 = vpop.f32.mrb[0].mxu0
  %v328 = vadd.f32 0.0, %v327
  %v329 = vpop.f32.mrb[0].mxu0
  %v330 = vadd.f32 0.0, %v329
  %331 = vdwg.mxu0
  %v332 = vmax.f32 %v115, 0.0
  %v333 = vmax.f32 %v117, 0.0
  %v334 = vmax.f32 %v186, 0.0
  %v335 = vmax.f32 %v188, 0.0
  %v336 = vmax.f32 %v257, 0.0
  %v337 = vmax.f32 %v259, 0.0
  %v338 = vmax.f32 %v328, 0.0
  %v339 = vmax.f32 %v330, 0.0
  %340 = vst [vmem:[%s2] sm:$0xff] %v332
  %341 = vst [vmem:[%s2 + $0x8] sm:$0xff] %v333
  %342 = vst [vmem:[%s2 + $0x10] sm:$0xff] %v334
  %343 = vst [vmem:[%s2 + $0x18] sm:$0xff] %v335
  %344 = vst [vmem:[%s2 + $0x20] sm:$0xff] %v336
  %345 = vst [vmem:[%s2 + $0x28] sm:$0xff] %v337
  %346 = vst [vmem:[%s2 + $0x30] sm:$0xff] %v338
  %347 = vst [vmem:[%s2 + $0x38] sm:$0xff] %v339
  // Predicated region
  $region10: #{model_forward.1} parent=0 // pred_check
    _
  $region11: #{model_forward.1} parent=0 // pred_check_branch
    %349 = sbr.rel (0) target = $region13
  $region12: #{model_forward.1} parent=0 // pred_region
    _
  $region13: #{model_forward.1} parent=0 // pred_fallthru
    _
  // Predicated region
  $region14: #{model_forward.1} parent=0 // pred_check
    _
  $region15: #{model_forward.1} parent=0 // pred_check_branch
    %351 = sbr.rel (0) target = $region17
  $region16: #{model_forward.1} parent=0 // pred_region
    _
  $region17: #{model_forward.1} parent=0 // pred_fallthru
    _

</llo_original>
